<compile_context>
chip_gen: v6e
topology: v6e:2x2x1
jax: 0.10.0
libtpu: 0.0.40
codegen_flags: <defaults>
</compile_context>

<pallas_src>
import functools

import jax
import jax.numpy as jnp
from jax.experimental import pallas as pl
from jax.experimental.pallas import tpu as pltpu

LN_EPS = 1e-5  # PyTorch nn.LayerNorm default


# ----------------------------------------------------------------------------
# In-kernel helpers
# ----------------------------------------------------------------------------
def _layernorm(x, gamma, beta):
    mean = jnp.mean(x, axis=-1, keepdims=True)
    var = jnp.mean(jnp.square(x - mean), axis=-1, keepdims=True)
    return (x - mean) * jax.lax.rsqrt(var + LN_EPS) * gamma + beta


def _pick_row_tile(m):
    for t in (512, 256, 128, 64, 32, 16, 8):
        if m % t == 0:
            return t
    return m


# ----------------------------------------------------------------------------
# Kernels
# ----------------------------------------------------------------------------
def linear_kernel(x_ref, w_ref, b_ref, o_ref):
    # (tm, K) @ (K, D) + (1, D); bf16 MXU inputs, f32 accumulation.
    o_ref[...] = (
        jnp.dot(x_ref[...].astype(jnp.bfloat16), w_ref[...],
                preferred_element_type=jnp.float32)
        + b_ref[...]
    )


def layernorm_kernel(x_ref, g_ref, b_ref, o_ref):
    o_ref[...] = _layernorm(x_ref[...], g_ref[...], b_ref[...])


def transformer_layer_kernel(
    x_ref, alibi_ref,
    ln1_g_ref, ln1_b_ref,
    wq_ref, wk_ref, wv_ref,
    wo_ref, bo_ref,
    ln2_g_ref, ln2_b_ref,
    w1_ref, b1_ref, w2_ref, b2_ref,
    o_ref,
    q_s, k_s, v_s,
    *, heads,
):
    x = x_ref[0]                                   # (N, D) f32 for this batch elt

    # ---------------- Attention (pre-LN) ----------------
    xn = _layernorm(x, ln1_g_ref[...], ln1_b_ref[...])
    xn_b = xn.astype(jnp.bfloat16)

    # Head-major QKV projection: one (N, D) @ (D, dh) matmul per head, written
    # directly into (H, N, dh) bf16 scratch.  No lane-misaligned activation
    # slicing, no concatenate.  The softmax scale is pre-folded into wq.
    for h in range(heads):
        q_s[h] = jnp.dot(xn_b, wq_ref[h],
                         preferred_element_type=jnp.float32).astype(jnp.bfloat16)
        k_s[h] = jnp.dot(xn_b, wk_ref[h],
                         preferred_element_type=jnp.float32).astype(jnp.bfloat16)
        v_s[h] = jnp.dot(xn_b, wv_ref[h],
                         preferred_element_type=jnp.float32).astype(jnp.bfloat16)

    q = q_s[...]                                    # (H, N, dh) bf16
    k = k_s[...]
    v = v_s[...]

    # Batched-over-heads attention; bf16 MXU inputs, f32 accumulation.
    scores = jnp.einsum('hqc,hkc->hqk', q, k,
                        preferred_element_type=jnp.float32)      # (H, N, N)
    scores = scores + alibi_ref[0].astype(jnp.float32)
    scores = scores - jnp.max(scores, axis=-1, keepdims=True)
    p = jnp.exp(scores)
    inv_denom = pl.reciprocal(jnp.sum(p, axis=-1, keepdims=True), approx=True)
    ctx = jnp.einsum('hqk,hkc->hqc', p.astype(jnp.bfloat16), v,
                     preferred_element_type=jnp.float32)         # (H, N, dh)
    # Normalize the (H, N, dh) context instead of the (H, N, N) probabilities.
    ctx = (ctx * inv_denom).astype(jnp.bfloat16)

    # Out-projection fused per head: (H,N,dh) x (H,dh,D) batched matmul summed
    # over heads -> lane-dense (N, D) result, no concat / relayout.
    proj = jnp.einsum('hqc,hcd->hqd', ctx, wo_ref[...],
                      preferred_element_type=jnp.float32)        # (H, N, D)
    attn_out = jnp.sum(proj, axis=0) + bo_ref[...]               # (N, D)

    x1 = x + attn_out

    # ---------------- FFN (pre-LN) ----------------
    xn2 = _layernorm(x1, ln2_g_ref[...], ln2_b_ref[...])
    hid = jnp.dot(xn2.astype(jnp.bfloat16), w1_ref[...],
                  preferred_element_type=jnp.float32) + b1_ref[...]
    hid = jax.nn.gelu(hid, approximate=False)   # exact erf GELU == torch.nn.GELU()
    y = jnp.dot(hid.astype(jnp.bfloat16), w2_ref[...],
                preferred_element_type=jnp.float32) + b2_ref[...]

    o_ref[0] = x1 + y


# ----------------------------------------------------------------------------
# Wrappers
# ----------------------------------------------------------------------------
def linear_input(x_flat, w_bf16, b):
    M, K = x_flat.shape
    D = w_bf16.shape[1]
    tm = _pick_row_tile(M)
    return pl.pallas_call(
        linear_kernel,
        out_shape=jax.ShapeDtypeStruct((M, D), jnp.float32),
        grid=(M // tm,),
        in_specs=[
            pl.BlockSpec((tm, K), lambda i: (i, 0)),
            pl.BlockSpec((K, D), lambda i: (0, 0)),
            pl.BlockSpec((1, D), lambda i: (0, 0)),
        ],
        out_specs=pl.BlockSpec((tm, D), lambda i: (i, 0)),
        compiler_params=pltpu.CompilerParams(dimension_semantics=("parallel",)),
    )(x_flat, w_bf16, b)


def final_layernorm(x_flat, g, b):
    M, D = x_flat.shape
    tm = _pick_row_tile(M)
    return pl.pallas_call(
        layernorm_kernel,
        out_shape=jax.ShapeDtypeStruct((M, D), jnp.float32),
        grid=(M // tm,),
        in_specs=[
            pl.BlockSpec((tm, D), lambda i: (i, 0)),
            pl.BlockSpec((1, D), lambda i: (0, 0)),
            pl.BlockSpec((1, D), lambda i: (0, 0)),
        ],
        out_specs=pl.BlockSpec((tm, D), lambda i: (i, 0)),
        compiler_params=pltpu.CompilerParams(dimension_semantics=("parallel",)),
    )(x_flat, g, b)


def run_transformer_layer(x, alibi_bf16, p, heads):
    B, N, D = x.shape
    H = heads
    dh = D // H
    Dff = p["w1"].shape[1]

    def const(shape):
        zeros = (0,) * len(shape)
        return pl.BlockSpec(shape, lambda b, _z=zeros: _z)

    in_specs = [
        pl.BlockSpec((1, N, D), lambda b: (b, 0, 0)),           # x
        pl.BlockSpec((1, H, N, N), lambda b: (b, 0, 0, 0)),     # alibi (bf16)
        const((1, D)), const((1, D)),                           # ln1 gamma/beta
        const((H, D, dh)), const((H, D, dh)), const((H, D, dh)),  # Wq, Wk, Wv
        const((H, dh, D)), const((1, D)),                       # Wo (head-major), bo
        const((1, D)), const((1, D)),                           # ln2 gamma/beta
        const((D, Dff)), const((1, Dff)),                       # W1, b1
        const((Dff, D)), const((1, D)),                         # W2, b2
    ]
    return pl.pallas_call(
        functools.partial(transformer_layer_kernel, heads=heads),
        out_shape=jax.ShapeDtypeStruct((B, N, D), jnp.float32),
        grid=(B,),
        in_specs=in_specs,
        out_specs=pl.BlockSpec((1, N, D), lambda b: (b, 0, 0)),
        scratch_shapes=[
            pltpu.VMEM((H, N, dh), jnp.bfloat16),   # q
            pltpu.VMEM((H, N, dh), jnp.bfloat16),   # k
            pltpu.VMEM((H, N, dh), jnp.bfloat16),   # v
        ],
        compiler_params=pltpu.CompilerParams(
            dimension_semantics=("parallel",),
            vmem_limit_bytes=48 * 1024 * 1024,
        ),
    )(
        x, alibi_bf16,
        p["ln1_g"], p["ln1_b"],
        p["wq"], p["wk"], p["wv"],
        p["wo"], p["bo"],
        p["ln2_g"], p["ln2_b"],
        p["w1"], p["b1"], p["w2"], p["b2"],
    )


def vit_forward(imgs, attn_bias, params, *, patch_size, heads):
    """ViT.forward with mask_info=None."""
    B, C, H, W = imgs.shape
    ph, pw = H // patch_size, W // patch_size
    # rearrange 'b c (h i) (w j) -> b (h w) (c i j)'
    x = imgs.reshape(B, C, ph, patch_size, pw, patch_size)
    x = jnp.transpose(x, (0, 2, 4, 1, 3, 5))
    x = x.reshape(B, ph * pw, C * patch_size * patch_size)
    N, P = x.shape[1], x.shape[2]

    D = params["win"].shape[1]
    xf = linear_input(x.reshape(B * N, P), params["win"], params["bin"])
    x = xf.reshape(B, N, D)

    alibi_bf16 = attn_bias.astype(jnp.bfloat16)   # halve alibi HBM traffic
    for lp in params["layers"]:
        x = run_transformer_layer(x, alibi_bf16, lp, heads)

    xf = final_layernorm(x.reshape(B * N, D), params["lnf_g"], params["lnf_b"])
    return xf.reshape(B, N, D)

    # TODO(synk): mask_info branch (apply_mask_to_sequence / torch.gather) not
    # implemented; it would need a scalar-prefetch gather BlockSpec.


# ----------------------------------------------------------------------------
# Deterministic parameter init (shapes follow the nn.Module __init__) and
# conversion to the kernel's head-major / bf16 layout.
# ----------------------------------------------------------------------------
def init_params(key, *, dim, layers, pixels_per_patch, ff_mult=4):
    ks = iter(jax.random.split(key, 4 + 8 * layers))

    def w(shape):
        return jax.random.normal(next(ks), shape, jnp.float32) * 0.02

    params = {
        "win": w((pixels_per_patch, dim)),          # linear_input.weight^T
        "bin": w((1, dim)),                         # linear_input.bias
        "lnf_g": jnp.ones((1, dim), jnp.float32),   # norm_out
        "lnf_b": jnp.zeros((1, dim), jnp.float32),
        "layers": [],
    }
    inner = int(dim * ff_mult)
    for _ in range(layers):
        params["layers"].append({
            "ln1_g": jnp.ones((1, dim), jnp.float32),
            "ln1_b": jnp.zeros((1, dim), jnp.float32),
            "wqkv": w((dim, 3 * dim)),               # create_qkv (no bias)
            "wo": w((dim, dim)),
            "bo": w((1, dim)),
            "ln2_g": jnp.ones((1, dim), jnp.float32),
            "ln2_b": jnp.zeros((1, dim), jnp.float32),
            "w1": w((dim, inner)),
            "b1": w((1, inner)),
            "w2": w((inner, dim)),
            "b2": w((1, dim)),
        })
    return params


def prepare_params(raw, heads):
    """Convert PyTorch-shaped f32 params to the kernel layout:
    head-major bf16 attention weights with the softmax scale folded into Wq."""
    D = raw["win"].shape[1]
    assert D % heads == 0
    dh = D // heads
    scale = dh ** -0.5

    def to_heads(w):  # (D, D) with outputs ordered (h, dh) -> (H, D, dh)
        return jnp.transpose(w.reshape(D, heads, dh), (1, 0, 2)).astype(jnp.bfloat16)

    prepared = {
        "win": raw["win"].astype(jnp.bfloat16),
        "bin": raw["bin"],
        "lnf_g": raw["lnf_g"],
        "lnf_b": raw["lnf_b"],
        "layers": [],
    }
    for lp in raw["layers"]:
        wq = lp["wqkv"][:, 0 * D:1 * D] * scale     # fold 1/sqrt(dh) into Wq
        wk = lp["wqkv"][:, 1 * D:2 * D]
        wv = lp["wqkv"][:, 2 * D:3 * D]
        prepared["layers"].append({
            "ln1_g": lp["ln1_g"], "ln1_b": lp["ln1_b"],
            "wq": to_heads(wq), "wk": to_heads(wk), "wv": to_heads(wv),
            # out proj input dim is ordered (h, dh) -> (H, dh, D)
            "wo": lp["wo"].reshape(heads, dh, D).astype(jnp.bfloat16),
            "bo": lp["bo"],
            "ln2_g": lp["ln2_g"], "ln2_b": lp["ln2_b"],
            "w1": lp["w1"].astype(jnp.bfloat16), "b1": lp["b1"],
            "w2": lp["w2"].astype(jnp.bfloat16), "b2": lp["b2"],
        })
    return prepared


# ----------------------------------------------------------------------------
if __name__ == "__main__":
    # Small config consistent with the module's forward:
    #   imgs (B, C, H, W) = (2, 3, 32, 32), patch_size=8  -> N=16 patches,
    #   pixels_per_patch = 8*8*3 = 192, dim=128, heads=4, layers=2.
    B, C, IMG, PATCH = 2, 3, 32, 8
    DIM, HEADS, LAYERS = 128, 4, 2
    N = (IMG // PATCH) ** 2
    PPP = PATCH * PATCH * C

    key = jax.random.PRNGKey(0)
    k_img, k_bias, k_par = jax.random.split(key, 3)

    imgs = jax.random.normal(k_img, (B, C, IMG, IMG), jnp.float32)
    attn_bias = jax.random.normal(k_bias, (B, HEADS, N, N), jnp.float32) * 0.1
    raw_params = init_params(k_par, dim=DIM, layers=LAYERS, pixels_per_patch=PPP)
    params = prepare_params(raw_params, HEADS)

    out = vit_forward(imgs, attn_bias, params, patch_size=PATCH, heads=HEADS)
    out = jax.block_until_ready(out)
    assert out.shape == (B, N, DIM) and out.dtype == jnp.float32
    print("KERNEL_OK")
</pallas_src>

<mosaic_0001>
module attributes {stable_mosaic.version = 11 : i64} {
  func.func @linear_kernel(%arg0: i32, %arg1: memref<32x192xf32, #tpu.memory_space<vmem>>, %arg2: memref<192x128xbf16, #tpu.memory_space<vmem>>, %arg3: memref<1x128xf32, #tpu.memory_space<vmem>>, %arg4: memref<32x128xf32, #tpu.memory_space<vmem>>) attributes {dimension_semantics = [#tpu.dimension_semantics<parallel>], iteration_bounds = array<i64: 1>, scalar_prefetch = 0 : i64, scratch_operands = 0 : i64, tpu.core_type = #tpu.core_type<tc>, window_params = [{transform_indices = @transform_0, window_bounds = array<i64: 32, 192>}, {pipeline_mode = #tpu.pipeline_mode<synchronous>, transform_indices = @transform_1, window_bounds = array<i64: 192, 128>}, {pipeline_mode = #tpu.pipeline_mode<synchronous>, transform_indices = @transform_2, window_bounds = array<i64: 1, 128>}, {transform_indices = @transform_3, window_bounds = array<i64: 32, 128>}]} {
    %c0 = arith.constant 0 : index
    %c0_0 = arith.constant 0 : index
    %0 = vector.load %arg1[%c0, %c0_0] : memref<32x192xf32, #tpu.memory_space<vmem>>, vector<32x192xf32>
    %1 = arith.truncf %0 : vector<32x192xf32> to vector<32x192xbf16>
    %c0_1 = arith.constant 0 : index
    %c0_2 = arith.constant 0 : index
    %2 = vector.load %arg2[%c0_1, %c0_2] : memref<192x128xbf16, #tpu.memory_space<vmem>>, vector<192x128xbf16>
    %cst = arith.constant dense<0.000000e+00> : vector<32x128xf32>
    %3 = tpu.matmul %1, %2, %cst {dimension_numbers = #tpu.dot_dimension_numbers<[1], [0], [0], [1], [0, 0, 1, 1], [], []>} : vector<32x192xbf16>, vector<192x128xbf16>, vector<32x128xf32> -> vector<32x128xf32>
    %c0_3 = arith.constant 0 : index
    %c0_4 = arith.constant 0 : index
    %4 = vector.load %arg3[%c0_3, %c0_4] : memref<1x128xf32, #tpu.memory_space<vmem>>, vector<1x128xf32>
    %5 = vector.broadcast %4 : vector<1x128xf32> to vector<32x128xf32>
    %6 = arith.addf %3, %5 : vector<32x128xf32>
    %c0_5 = arith.constant 0 : index
    %c0_6 = arith.constant 0 : index
    %7 = vector.load %arg4[%c0_5, %c0_6] : memref<32x128xf32, #tpu.memory_space<vmem>>, vector<32x128xf32>
    tpu.vector_store %arg4[%c0_5, %c0_6], %6 {strides = array<i32>} : memref<32x128xf32, #tpu.memory_space<vmem>>, vector<32x128xf32>,
    return
  }
  func.func @transform_0(%arg0: i32) -> (i32, i32) {
    %c0_i32 = arith.constant 0 : i32
    %c0_i32_0 = arith.constant 0 : i32
    return %arg0, %c0_i32 : i32, i32
  }
  func.func @transform_1(%arg0: i32) -> (i32, i32) {
    %c0_i32 = arith.constant 0 : i32
    %c0_i32_0 = arith.constant 0 : i32
    %c0_i32_1 = arith.constant 0 : i32
    return %c0_i32, %c0_i32_0 : i32, i32
  }
  func.func @transform_2(%arg0: i32) -> (i32, i32) {
    %c0_i32 = arith.constant 0 : i32
    %c0_i32_0 = arith.constant 0 : i32
    %c0_i32_1 = arith.constant 0 : i32
    return %c0_i32, %c0_i32_0 : i32, i32
  }
  func.func @transform_3(%arg0: i32) -> (i32, i32) {
    %c0_i32 = arith.constant 0 : i32
    %c0_i32_0 = arith.constant 0 : i32
    return %arg0, %c0_i32 : i32, i32
  }
}

</mosaic_0001>

<llo_original>
// kernel: tpu_custom_call.1
$region0: #{tpu_custom_call.1}
  #allocation0 [shape = 'u32[]', space=smem, size = 0x4, offset = 0x4, fixed_abs, tag = 'smem constant byte address 0x4 - core index']
  #allocation1 [shape = 'u32[144,128]{1,0:T(1,128)}', space=vmem, size = 0x12000, scoped, tag = 'internal scratch']
  %s0 = inlined_call_operand.hbm [shape: f32[32,192], index: 0, kind: input, shape index: {}]
  %s1 = inlined_call_operand.hbm [shape: bf16[192,128], index: 1, kind: input, shape index: {}]
  %s2 = inlined_call_operand.vmem [shape: f32[1,128], index: 2, kind: input, shape index: {}]
  %s3 = inlined_call_operand.hbm [shape: f32[32,128], index: 3, kind: output, shape index: {}]
  %s4 = sld [smem:[#allocation0]]
  $region30: #{tpu_custom_call.1} parent=0
    _
  %s6 = ssub.s32 1, %s4
  %s7 = scalar_select 0, %s6, %s4
  $region1: #{tpu_custom_call.1} parent=0
    #allocation2 [shape = 'u8[32768]{0}', space=vmem, size = 0x8000, scoped, tag = 'input window, operand 0, single buffered']
    #allocation3 [shape = 's32[1]{0}', space=sflag, size = 0x4, scoped, tag = 'scoped memory for tpu_custom_call.1']
    #allocation4 [shape = 's32[1]{0}', space=sflag, size = 0x4, scoped, tag = 'scoped memory for tpu_custom_call.1']
    #allocation5 [shape = 'u8[49152]{0}', space=vmem, size = 0xc000, scoped, tag = 'input window, operand 1, single buffered']
    #allocation6 [shape = 's32[1]{0}', space=sflag, size = 0x4, scoped, tag = 'scoped memory for tpu_custom_call.1']
    #allocation7 [shape = 'u8[16384]{0}', space=vmem, size = 0x4000, scoped, tag = 'output window, operand 0, single buffered']
    %8 = vsyncpa [#allocation3], 0
    %9 = vsyncpa [#allocation6], 0
    %10 = vsyncpa [#allocation4], 0
    // Predicated region
    $region2: #{tpu_custom_call.1} parent=1 // pred_check
      _
    $region3: #{tpu_custom_call.1} parent=1 // pred_check_branch
      %12 = sbr.rel (0) target = $region5
    $region4: #{tpu_custom_call.1} parent=1 // pred_region
      %s14 = ssub.s32 1024, 1024
      %15 = vsyncadd [#allocation3], %s14
      %s16 = sshll.u32 [#allocation2], 4
      %s17 = int_to_ptr.vmem [resolvable:$true] %s16
      %22 = dma.hbm_to_vmem [thread:$0]  %s0, 1024, %s17, [#allocation3], 256, 256, 16
    $region5: #{tpu_custom_call.1} parent=1 // pred_fallthru
      _
    // Predicated region
    $region6: #{tpu_custom_call.1} parent=1 // pred_check
      _
    $region7: #{tpu_custom_call.1} parent=1 // pred_check_branch
      %24 = sbr.rel (0) target = $region9
    $region8: #{tpu_custom_call.1} parent=1 // pred_region
      %s26 = ssub.s32 1536, 1536
      %27 = vsyncadd [#allocation6], %s26
      %s28 = sshll.u32 [#allocation5], 4
      %s29 = int_to_ptr.vmem [resolvable:$true] %s28
      %34 = dma.hbm_to_vmem [thread:$0]  %s1, 1536, %s29, [#allocation6], 64, 64, 4
    $region9: #{tpu_custom_call.1} parent=1 // pred_fallthru
      _
    // Predicated region
    $region10: #{tpu_custom_call.1} parent=1 // pred_check
      _
    $region11: #{tpu_custom_call.1} parent=1 // pred_check_branch
      %36 = sbr.rel (0) target = $region13
    $region12: #{tpu_custom_call.1} parent=1 // pred_region
      _
    $region13: #{tpu_custom_call.1} parent=1 // pred_fallthru
      _
    // Predicated region
    $region14: #{tpu_custom_call.1} parent=1 // pred_check
      _
    $region15: #{tpu_custom_call.1} parent=1 // pred_check_branch
      %38 = sbr.rel (0) target = $region17
    $region16: #{tpu_custom_call.1} parent=1 // pred_region
      %39 = dma.done [#allocation3], 1024
    $region17: #{tpu_custom_call.1} parent=1 // pred_fallthru
      _
    // Predicated region
    $region18: #{tpu_custom_call.1} parent=1 // pred_check
      _
    $region19: #{tpu_custom_call.1} parent=1 // pred_check_branch
      %41 = sbr.rel (0) target = $region21
    $region20: #{tpu_custom_call.1} parent=1 // pred_region
      %42 = dma.done [#allocation6], 1536
    $region21: #{tpu_custom_call.1} parent=1 // pred_fallthru
      _
    %v44 = vld [vmem:[#allocation2] sm:$0xff]
    %v45 = vld [vmem:[#allocation2 + $0x8] sm:$0xff]
    %v46 = vld [vmem:[#allocation2 + $0x10] sm:$0xff]
    %v47 = vld [vmem:[#allocation2 + $0x18] sm:$0xff]
    %v48 = vld [vmem:[#allocation2 + $0x20] sm:$0xff]
    %v49 = vld [vmem:[#allocation2 + $0x28] sm:$0xff]
    %v50 = vld [vmem:[#allocation2 + $0x30] sm:$0xff]
    %v51 = vld [vmem:[#allocation2 + $0x38] sm:$0xff]
    %v52 = vpack.c.bf16 %v46, %v44
    %v53 = vpack.c.bf16 %v47, %v45
    %v54 = vpack.c.bf16 %v50, %v48
    %v55 = vpack.c.bf16 %v51, %v49
    %v56 = vld [vmem:[#allocation5] sm:$0xf]
    %v57 = vld [vmem:[#allocation5 + $0x4] sm:$0xf]
    %v58 = vld [vmem:[#allocation5 + $0x8] sm:$0xf]
    %v59 = vld [vmem:[#allocation5 + $0xc] sm:$0xf]
    %v60 = vld [vmem:[#allocation5 + $0x10] sm:$0xf]
    %v61 = vld [vmem:[#allocation5 + $0x14] sm:$0xf]
    %v62 = vld [vmem:[#allocation5 + $0x18] sm:$0xf]
    %v63 = vld [vmem:[#allocation5 + $0x1c] sm:$0xf]
    %v64 = vld [vmem:[#allocation5 + $0x20] sm:$0xf]
    %v65 = vld [vmem:[#allocation5 + $0x24] sm:$0xf]
    %v66 = vld [vmem:[#allocation5 + $0x28] sm:$0xf]
    %v67 = vld [vmem:[#allocation5 + $0x2c] sm:$0xf]
    %v68 = vld [vmem:[#allocation5 + $0x30] sm:$0xf]
    %v69 = vld [vmem:[#allocation5 + $0x34] sm:$0xf]
    %v70 = vld [vmem:[#allocation5 + $0x38] sm:$0xf]
    %v71 = vld [vmem:[#allocation5 + $0x3c] sm:$0xf]
    %v72 = vld [vmem:[#allocation5 + $0x40] sm:$0xf]
    %v73 = vld [vmem:[#allocation5 + $0x44] sm:$0xf]
    %v74 = vld [vmem:[#allocation5 + $0x48] sm:$0xf]
    %v75 = vld [vmem:[#allocation5 + $0x4c] sm:$0xf]
    %v76 = vld [vmem:[#allocation5 + $0x50] sm:$0xf]
    %v77 = vld [vmem:[#allocation5 + $0x54] sm:$0xf]
    %v78 = vld [vmem:[#allocation5 + $0x58] sm:$0xf]
    %v79 = vld [vmem:[#allocation5 + $0x5c] sm:$0xf]
    %v80 = vld [vmem:[%s2] sm:$0x1]
    %v82 = vlaneseq
    %v83 = vshrl.u32 %v82, 7
    %v84 = vsub.s32 0, %v83
    %v85 = vrot.slane %v80, %v84
    %v111 = vunpack.c.l.b16 %v56
    %v112 = vunpack.c.l.b16 %v57
    %v113 = vunpack.c.l.b16 %v58
    %v114 = vunpack.c.l.b16 %v59
    %v115 = vunpack.c.l.b16 %v60
    %v116 = vunpack.c.l.b16 %v61
    %v117 = vunpack.c.l.b16 %v62
    %v118 = vunpack.c.l.b16 %v63
    %v119 = vunpack.c.l.b16 %v64
    %v120 = vunpack.c.l.b16 %v65
    %v121 = vunpack.c.l.b16 %v66
    %v122 = vunpack.c.l.b16 %v67
    %v123 = vunpack.c.l.b16 %v68
    %v124 = vunpack.c.l.b16 %v69
    %v125 = vunpack.c.l.b16 %v70
    %v126 = vunpack.c.l.b16 %v71
    %v127 = vunpack.c.l.b16 %v72
    %v128 = vunpack.c.l.b16 %v73
    %v129 = vunpack.c.l.b16 %v74
    %v130 = vunpack.c.l.b16 %v75
    %v131 = vunpack.c.l.b16 %v76
    %v132 = vunpack.c.l.b16 %v77
    %v133 = vunpack.c.l.b16 %v78
    %v134 = vunpack.c.l.b16 %v79
    %v135 = vpack.c.b16 %v112, %v111
    %v136 = vpack.c.b16 %v114, %v113
    %v137 = vpack.c.b16 %v116, %v115
    %v138 = vpack.c.b16 %v118, %v117
    %v139 = vpack.c.b16 %v120, %v119
    %v140 = vpack.c.b16 %v122, %v121
    %v141 = vpack.c.b16 %v124, %v123
    %v142 = vpack.c.b16 %v126, %v125
    %v143 = vpack.c.b16 %v128, %v127
    %v144 = vpack.c.b16 %v130, %v129
    %v145 = vpack.c.b16 %v132, %v131
    %v146 = vpack.c.b16 %v134, %v133
    %vm159 = vcmask 523264
    %v161 = vsel %vm159, %v53, 0
    %v164 = vsel %vm159, %v55, 0
    %166 = vmatprep.subr.bf16.mxu0 0
    %167 = vmatpush1.bf16.msra.mxu0 %v142
    %168 = vmatprep.subr.bf16.mxu0 0
    %169 = vmatpush1.bf16.msra.mxu0 %v141
    %170 = vmatprep.subr.bf16.mxu0 0
    %171 = vmatpush1.bf16.msra.mxu0 %v140
    %172 = vmatprep.subr.bf16.mxu0 0
    %173 = vmatpush1.bf16.msra.mxu0 %v139
    %174 = vmatprep.subr.bf16.mxu0 0
    %175 = vmatpush1.bf16.msra.mxu0 %v138
    %176 = vmatprep.subr.bf16.mxu0 0
    %177 = vmatpush1.bf16.msra.mxu0 %v137
    %178 = vmatprep.subr.bf16.mxu0 0
    %179 = vmatpush1.bf16.msra.mxu0 %v136
    %180 = vmatprep.subr.bf16.mxu0 0
    %181 = vmatpush1.bf16.msra.mxu0 %v135
    %182 = vmatprep.subr.bf16.mxu0 0
    %183 = vmatpush2.bf16.msra.mxu0 0
    %184 = vmatprep.subr.bf16.mxu0 0
    %185 = vmatpush2.bf16.msra.mxu0 0
    %186 = vmatprep.subr.bf16.mxu0 0
    %187 = vmatpush2.bf16.msra.mxu0 0
    %188 = vmatprep.subr.bf16.mxu0 0
    %189 = vmatpush2.bf16.msra.mxu0 0
    %190 = vmatprep.subr.bf16.mxu0 0
    %191 = vmatpush2.bf16.msra.mxu0 %v146
    %192 = vmatprep.subr.bf16.mxu0 0
    %193 = vmatpush2.bf16.msra.mxu0 %v145
    %194 = vmatprep.subr.bf16.mxu0 0
    %195 = vmatpush2.bf16.msra.mxu0 %v144
    %196 = vmatprep.subr.bf16.mxu0 0
    %197 = vmatpush2.bf16.msra.mxu0 %v143
    %198 = vmatprep.mubr.bf16.mxu0 %v161
    %199 = vmatmul.mubr.bf16.gmra.mxu0 %v52
    %v200 = vpop.f32.mrf.mxu0
    %v201 = vadd.f32 %v85, %v200
    %v202 = vpop.f32.mrf.mxu0
    %v203 = vpop.f32.mrf.mxu0
    %v204 = vadd.f32 %v85, %v203
    %v205 = vpop.f32.mrf.mxu0
    %206 = vmatprep.mubr.bf16.mxu0 %v164
    %207 = vmatmul.mubr.bf16.gmra.mxu0 %v54
    %v208 = vpop.f32.mrf.mxu0
    %v209 = vadd.f32 %v85, %v208
    %v210 = vpop.f32.mrf.mxu0
    %v211 = vpop.f32.mrf.mxu0
    %v212 = vadd.f32 %v85, %v211
    %v213 = vpop.f32.mrf.mxu0
    %214 = vdwg.mxu0
    %215 = vst [vmem:[#allocation7] sm:$0xff] %v201
    %216 = vst [vmem:[#allocation7 + $0x8] sm:$0xff] %v204
    %217 = vst [vmem:[#allocation7 + $0x10] sm:$0xff] %v209
    %218 = vst [vmem:[#allocation7 + $0x18] sm:$0xff] %v212
    // Predicated region
    $region22: #{tpu_custom_call.1} parent=1 // pred_check
      _
    $region23: #{tpu_custom_call.1} parent=1 // pred_check_branch
      %220 = sbr.rel (0) target = $region25
    $region24: #{tpu_custom_call.1} parent=1 // pred_region
      %s222 = ssub.s32 512, 512
      %223 = vsyncadd [#allocation4], %s222
      %s224 = sshll.u32 [#allocation7], 4
      %s225 = int_to_ptr.vmem [resolvable:$true] %s224
      %230 = dma.vmem_to_hbm [thread:$0]  %s225, 512, %s3, [#allocation4], 128, 128, 8
    $region25: #{tpu_custom_call.1} parent=1 // pred_fallthru
      _
    // Predicated region
    $region26: #{tpu_custom_call.1} parent=1 // pred_check
      _
    $region27: #{tpu_custom_call.1} parent=1 // pred_check_branch
      %232 = sbr.rel (0) target = $region29
    $region28: #{tpu_custom_call.1} parent=1 // pred_region
      %233 = dma.done [#allocation4], 512
    $region29: #{tpu_custom_call.1} parent=1 // pred_fallthru
      _
    %234 = vsyncpa [#allocation3], 1
    %235 = vsyncpa [#allocation6], 1
    %236 = vsyncpa [#allocation4], 1

</llo_original>
